<compile_context>
chip_gen: v7x
topology: tpu7x:2x2x1
jax: 0.10.0
libtpu: 0.0.40
codegen_flags: <defaults>
</compile_context>

<pallas_src>
import functools

import jax
import jax.numpy as jnp
from jax.experimental import pallas as pl
from jax.experimental.pallas import tpu as pltpu


NUM_SPLITS = 2                       # independent partial sums (v7x: 2 TCs)
G = 128                              # fused (B*T) positions per kernel row
MAX_TILE_ROWS = 1024                 # up to 128K fused positions per block
DB_INPUT_BUDGET = 24 * 1024 * 1024   # double-buffered input blocks (bytes)


@functools.partial(jax.jit, static_argnames=("max_tile_rows",))
def cmal_normalized_mean_absolute(yPred, yTrue, deviations=None, *args,
                                  max_tile_rows=None, **kwargs):
    """Forward of CMALNormalizedMeanAbsolute.

    yPred: tuple/list of (B, T, K) tensors; elements 0 and 3 are used.
    yTrue: (B, T).  `deviations` is unused by the forward (as in torch).
    """
    mu, pi = yPred[0], yPred[3]
    B, T, K = mu.shape
    assert pi.shape == (B, T, K) and yTrue.shape == (B, T)
    n = B * T
    rows = -(-n // G)

    # --- zero-copy layout: flat row-major reshapes only ----------------------
    mu_flat = mu.reshape(n * K)
    pi_flat = pi.reshape(n * K)
    yt_flat = yTrue.reshape(n)
    if rows * G != n:
        # Sub-128 remainder: pad the flat arrays (zero padding is exact for
        # this loss: |0*0 - 0| = 0).  Only this path costs an extra HBM copy.
        pad = rows * G - n
        mu_flat = jnp.pad(mu_flat, (0, pad * K))
        pi_flat = jnp.pad(pi_flat, (0, pad * K))
        yt_flat = jnp.pad(yt_flat, (0, pad))
    mu2 = mu_flat.reshape(rows, G * K)
    pi2 = pi_flat.reshape(rows, G * K)
    yt2 = yt_flat.reshape(rows, G)

    # 0/1 selection matrix: sums each group of K adjacent lanes via one MXU pass.
    sel = (jnp.arange(G * K, dtype=jnp.int32)[:, None] // K
           == jnp.arange(G, dtype=jnp.int32)[None, :]).astype(jnp.float32)

    # --- tile size: as large as the VMEM budget allows ------------------------
    row_bytes = (G * K * (mu2.dtype.itemsize + pi2.dtype.itemsize)
                 + G * yt2.dtype.itemsize)
    cap = MAX_TILE_ROWS if max_tile_rows is None else int(max_tile_rows)
    if rows >= 8:
        t = min(cap, DB_INPUT_BUDGET // (2 * row_bytes), rows)
        tile_rows = max(8, (t // 8) * 8)
    else:
        tile_rows = rows                       # block == full (small) array

    num_blocks = -(-rows // tile_rows)
    tiles_per_split = -(-num_blocks // NUM_SPLITS)

    def data_map(c, i):
        # Clamp so duplicated trailing blocks re-read an in-bounds block; their
        # contribution is masked to zero inside the kernel.
        return (jnp.minimum(c * tiles_per_split + i, num_blocks - 1), 0)

    def kernel(mu_ref, pi_ref, yt_ref, sel_ref, out_ref, acc_ref):
        c = pl.program_id(0)
        i = pl.program_id(1)

        @pl.when(i == 0)
        def _init():
            acc_ref[...] = jnp.zeros_like(acc_ref)

        prod = mu_ref[...].astype(jnp.float32) * pi_ref[...].astype(jnp.float32)
        # Group-sum over the K adjacent lanes of each position -> (tile_rows, 128).
        pred = jnp.dot(prod, sel_ref[...], preferred_element_type=jnp.float32)
        err = jnp.abs(pred - yt_ref[...].astype(jnp.float32))

        # Mask rows past the end of the data: ragged last block and duplicated
        # blocks contain garbage that must not reach the accumulator.
        base = (c * tiles_per_split + i) * tile_rows
        row_ids = base + jax.lax.broadcasted_iota(jnp.int32, err.shape, 0)
        acc_ref[...] += jnp.where(row_ids < rows, err, 0.0)

        @pl.when(i == pl.num_programs(1) - 1)
        def _finalize():
            total = jnp.sum(acc_ref[...])               # one XLU reduce per split
            out_ref[...] = jnp.full(out_ref.shape, total, dtype=out_ref.dtype)

    out_bytes = NUM_SPLITS * 8 * G * 4
    cost = pl.CostEstimate(
        flops=int(3 * n * K + 2 * n),
        transcendentals=0,
        bytes_accessed=int(mu2.size * mu2.dtype.itemsize
                           + pi2.size * pi2.dtype.itemsize
                           + yt2.size * yt2.dtype.itemsize
                           + sel.size * 4 + out_bytes),
    )

    partials = pl.pallas_call(
        kernel,
        out_shape=jax.ShapeDtypeStruct((NUM_SPLITS, 8, G), jnp.float32),
        grid=(NUM_SPLITS, tiles_per_split),
        in_specs=[
            pl.BlockSpec((tile_rows, G * K), data_map),
            pl.BlockSpec((tile_rows, G * K), data_map),
            pl.BlockSpec((tile_rows, G), data_map),
            pl.BlockSpec((G * K, G), lambda c, i: (0, 0)),   # constant selection
        ],
        out_specs=pl.BlockSpec((1, 8, G), lambda c, i: (c, 0, 0)),
        scratch_shapes=[pltpu.VMEM((tile_rows, G), jnp.float32)],
        compiler_params=pltpu.CompilerParams(
            dimension_semantics=("parallel", "arbitrary"),
            # Large-tile double buffering stays well under this; 48 MiB is
            # below v7x's 64 MiB physical VMEM and above v5e's 16 MiB default.
            vmem_limit_bytes=48 * 1024 * 1024,
        ),
        cost_estimate=cost,
    )(mu2, pi2, yt2, sel)

    # TODO(synk): torch's .item() host-scalar extraction is left to the caller.
    return jnp.sum(partials[:, 0, 0]) / jnp.float32(n)


def _reference(yPred, yTrue):
    pred = jnp.sum(yPred[0] * yPred[3], axis=-1)
    return jnp.mean(jnp.abs(pred - yTrue))


if __name__ == "__main__":
    root = jax.random.PRNGKey(0)
    key_a, key_b = jax.random.split(root)

    def make_inputs(key, B, T, K):
        k0, k1, k2, k3, k4 = jax.random.split(key, 5)
        yPred = (
            jax.random.normal(k0, (B, T, K), dtype=jnp.float32),    # locations
            jax.random.uniform(k1, (B, T, K), dtype=jnp.float32),   # (unused)
            jax.random.uniform(k2, (B, T, K), dtype=jnp.float32),   # (unused)
            jax.nn.softmax(jax.random.normal(k3, (B, T, K), dtype=jnp.float32), -1),
        )
        yTrue = jax.random.normal(k4, (B, T), dtype=jnp.float32)
        deviations = jnp.ones((B, T), dtype=jnp.float32)             # unused
        return yPred, yTrue, deviations

    # 1) Small shape (exercises the sub-128 pad path + masked duplicate block).
    yPred, yTrue, deviations = make_inputs(key_a, 2, 8, 4)
    result = jax.block_until_ready(
        cmal_normalized_mean_absolute(yPred, yTrue, deviations))
    expected = jax.block_until_ready(_reference(yPred, yTrue))
    assert jnp.allclose(result, expected, rtol=1e-5, atol=1e-5), (result, expected)

    # 2) Multi-block shape with a ragged last block (exercises the zero-copy
    #    reshape path, multi-step accumulation and in-kernel row masking):
    #    n = 2*1664 = 3328 = 26 * 128 rows, tile_rows capped to 8 -> 4 blocks.
    yPred2, yTrue2, dev2 = make_inputs(key_b, 2, 1664, 4)
    result2 = jax.block_until_ready(
        cmal_normalized_mean_absolute(yPred2, yTrue2, dev2, max_tile_rows=8))
    expected2 = jax.block_until_ready(_reference(yPred2, yTrue2))
    assert jnp.allclose(result2, expected2, rtol=1e-5, atol=1e-5), (result2, expected2)

    print("KERNEL_OK")
</pallas_src>

<mosaic_0001>
module attributes {stable_mosaic.version = 11 : i64} {
  func.func @kernel(%arg0: i32, %arg1: i32, %arg2: memref<1x512xf32, #tpu.memory_space<vmem>>, %arg3: memref<1x512xf32, #tpu.memory_space<vmem>>, %arg4: memref<1x128xf32, #tpu.memory_space<vmem>>, %arg5: memref<512x128xf32, #tpu.memory_space<vmem>>, %arg6: memref<1x8x128xf32, #tpu.memory_space<vmem>>, %arg7: memref<1x128xf32, #tpu.memory_space<vmem>>) attributes {dimension_semantics = [#tpu.dimension_semantics<parallel>, #tpu.dimension_semantics<arbitrary>], iteration_bounds = array<i64: 2, 1>, scalar_prefetch = 0 : i64, scratch_operands = 1 : i64, tpu.core_type = #tpu.core_type<tc>, window_params = [{transform_indices = @transform_0, window_bounds = array<i64: 1, 512>}, {transform_indices = @transform_1, window_bounds = array<i64: 1, 512>}, {transform_indices = @transform_2, window_bounds = array<i64: 1, 128>}, {pipeline_mode = #tpu.pipeline_mode<synchronous>, transform_indices = @transform_3, window_bounds = array<i64: 512, 128>}, {transform_indices = @transform_4, window_bounds = array<i64: 1, 8, 128>}]} {
    %c0_i32 = arith.constant 0 : i32
    %0 = arith.cmpi eq, %arg1, %c0_i32 : i32
    %1 = arith.extui %0 : i1 to i32
    %c0_i32_0 = arith.constant 0 : i32
    %2 = arith.cmpi ne, %1, %c0_i32_0 : i32
    scf.if %2 {
      %cst_17 = arith.constant 0.000000e+00 : f32
      %27 = vector.broadcast %cst_17 : f32 to vector<1x128xf32>
      %c0_18 = arith.constant 0 : index
      %c0_19 = arith.constant 0 : index
      %28 = vector.load %arg7[%c0_18, %c0_19] : memref<1x128xf32, #tpu.memory_space<vmem>>, vector<1x128xf32>
      tpu.vector_store %arg7[%c0_18, %c0_19], %27 {strides = array<i32>} : memref<1x128xf32, #tpu.memory_space<vmem>>, vector<1x128xf32>,
    } else {
    }
    %c0 = arith.constant 0 : index
    %c0_1 = arith.constant 0 : index
    %3 = vector.load %arg2[%c0, %c0_1] : memref<1x512xf32, #tpu.memory_space<vmem>>, vector<1x512xf32>
    %c0_2 = arith.constant 0 : index
    %c0_3 = arith.constant 0 : index
    %4 = vector.load %arg3[%c0_2, %c0_3] : memref<1x512xf32, #tpu.memory_space<vmem>>, vector<1x512xf32>
    %5 = arith.mulf %3, %4 : vector<1x512xf32>
    %c0_4 = arith.constant 0 : index
    %c0_5 = arith.constant 0 : index
    %6 = vector.load %arg5[%c0_4, %c0_5] : memref<512x128xf32, #tpu.memory_space<vmem>>, vector<512x128xf32>
    %cst = arith.constant dense<0.000000e+00> : vector<1x128xf32>
    %7 = tpu.matmul %5, %6, %cst {dimension_numbers = #tpu.dot_dimension_numbers<[1], [0], [0], [1], [0, 0, 1, 1], [], []>} : vector<1x512xf32>, vector<512x128xf32>, vector<1x128xf32> -> vector<1x128xf32>
    %c0_6 = arith.constant 0 : index
    %c0_7 = arith.constant 0 : index
    %8 = vector.load %arg4[%c0_6, %c0_7] : memref<1x128xf32, #tpu.memory_space<vmem>>, vector<1x128xf32>
    %9 = arith.subf %7, %8 : vector<1x128xf32>
    %10 = math.absf %9 : vector<1x128xf32>
    %c1_i32 = arith.constant 1 : i32
    %11 = arith.muli %arg0, %c1_i32 : i32
    %12 = arith.addi %11, %arg1 : i32
    %c1_i32_8 = arith.constant 1 : i32
    %13 = arith.muli %12, %c1_i32_8 : i32
    %14 = tpu.iota {dimensions = array<i32: 0>} : vector<1x128xi32>
    %15 = vector.broadcast %13 : i32 to vector<1x128xi32>
    %16 = arith.addi %15, %14 : vector<1x128xi32>
    %c0_9 = arith.constant 0 : index
    %c0_10 = arith.constant 0 : index
    %17 = vector.load %arg7[%c0_9, %c0_10] : memref<1x128xf32, #tpu.memory_space<vmem>>, vector<1x128xf32>
    %c1_i32_11 = arith.constant 1 : i32
    %18 = vector.broadcast %c1_i32_11 : i32 to vector<1x128xi32>
    %19 = arith.cmpi slt, %16, %18 : vector<1x128xi32>
    %cst_12 = arith.constant 0.000000e+00 : f32
    %20 = vector.broadcast %cst_12 : f32 to vector<1x128xf32>
    %21 = arith.select %19, %10, %20 : vector<1x128xi1>, vector<1x128xf32>
    %22 = arith.addf %17, %21 : vector<1x128xf32>
    %c0_13 = arith.constant 0 : index
    %c0_14 = arith.constant 0 : index
    %23 = vector.load %arg7[%c0_13, %c0_14] : memref<1x128xf32, #tpu.memory_space<vmem>>, vector<1x128xf32>
    tpu.vector_store %arg7[%c0_13, %c0_14], %22 {strides = array<i32>} : memref<1x128xf32, #tpu.memory_space<vmem>>, vector<1x128xf32>,
    %c0_i32_15 = arith.constant 0 : i32
    %24 = arith.cmpi eq, %arg1, %c0_i32_15 : i32
    %25 = arith.extui %24 : i1 to i32
    %c0_i32_16 = arith.constant 0 : i32
    %26 = arith.cmpi ne, %25, %c0_i32_16 : i32
    scf.if %26 {
      %c0_17 = arith.constant 0 : index
      %c0_18 = arith.constant 0 : index
      %27 = vector.load %arg7[%c0_17, %c0_18] : memref<1x128xf32, #tpu.memory_space<vmem>>, vector<1x128xf32>
      %28 = vector.shape_cast %27 : vector<1x128xf32> to vector<1x1x128xf32>
      %cst_19 = arith.constant dense<0.000000e+00> : vector<1xf32>
      %29 = vector.multi_reduction <add>, %28, %cst_19 [1, 2] : vector<1x1x128xf32> to vector<1xf32>
      %30 = vector.shape_cast %29 : vector<1xf32> to vector<1x1x1xf32>
      %31 = vector.extract %30[0, 0, 0] : f32 from vector<1x1x1xf32>
      %32 = vector.broadcast %31 : f32 to vector<1x8x128xf32>
      %c0_20 = arith.constant 0 : index
      %c0_21 = arith.constant 0 : index
      %c0_22 = arith.constant 0 : index
      %33 = vector.load %arg6[%c0_20, %c0_21, %c0_22] : memref<1x8x128xf32, #tpu.memory_space<vmem>>, vector<1x8x128xf32>
      tpu.vector_store %arg6[%c0_20, %c0_21, %c0_22], %32 {strides = array<i32>} : memref<1x8x128xf32, #tpu.memory_space<vmem>>, vector<1x8x128xf32>,
    } else {
    }
    return
  }
  func.func @transform_0(%arg0: i32, %arg1: i32) -> (i32, i32) {
    %c1_i32 = arith.constant 1 : i32
    %0 = arith.muli %arg0, %c1_i32 : i32
    %1 = arith.addi %0, %arg1 : i32
    %c0_i32 = arith.constant 0 : i32
    %2 = arith.minsi %1, %c0_i32 : i32
    %c0_i32_0 = arith.constant 0 : i32
    %c0_i32_1 = arith.constant 0 : i32
    return %2, %c0_i32_0 : i32, i32
  }
  func.func @transform_1(%arg0: i32, %arg1: i32) -> (i32, i32) {
    %c1_i32 = arith.constant 1 : i32
    %0 = arith.muli %arg0, %c1_i32 : i32
    %1 = arith.addi %0, %arg1 : i32
    %c0_i32 = arith.constant 0 : i32
    %2 = arith.minsi %1, %c0_i32 : i32
    %c0_i32_0 = arith.constant 0 : i32
    %c0_i32_1 = arith.constant 0 : i32
    return %2, %c0_i32_0 : i32, i32
  }
  func.func @transform_2(%arg0: i32, %arg1: i32) -> (i32, i32) {
    %c1_i32 = arith.constant 1 : i32
    %0 = arith.muli %arg0, %c1_i32 : i32
    %1 = arith.addi %0, %arg1 : i32
    %c0_i32 = arith.constant 0 : i32
    %2 = arith.minsi %1, %c0_i32 : i32
    %c0_i32_0 = arith.constant 0 : i32
    %c0_i32_1 = arith.constant 0 : i32
    return %2, %c0_i32_0 : i32, i32
  }
  func.func @transform_3(%arg0: i32, %arg1: i32) -> (i32, i32) {
    %c0_i32 = arith.constant 0 : i32
    %c0_i32_0 = arith.constant 0 : i32
    %c0_i32_1 = arith.constant 0 : i32
    return %c0_i32, %c0_i32_0 : i32, i32
  }
  func.func @transform_4(%arg0: i32, %arg1: i32) -> (i32, i32, i32) {
    %c0_i32 = arith.constant 0 : i32
    %c0_i32_0 = arith.constant 0 : i32
    %c0_i32_1 = arith.constant 0 : i32
    return %arg0, %c0_i32, %c0_i32_0 : i32, i32, i32
  }
}

</mosaic_0001>

<llo_original>
// kernel: cmal_normalized_mean_absolute.1
$region0: #{cmal_normalized_mean_absolute.1}
  #allocation0 [shape = 'u32[]', space=smem, size = 0x4, offset = 0x4, fixed_abs, tag = 'smem constant byte address 0x4 - core index']
  #allocation1 [shape = 'u32[144,128]{1,0:T(1,128)}', space=vmem, size = 0x12000, scoped, tag = 'internal scratch']
  #allocation2 [shape = 'f32[1,128]{1,0:T(1,128)}', space=vmem, size = 0x200, scoped, tag = 'scratch operand']
  %s0 = inlined_call_operand.vmem [shape: f32[1,512], index: 0, kind: input, shape index: {}]
  %s1 = inlined_call_operand.vmem [shape: f32[1,512], index: 1, kind: input, shape index: {}]
  %s2 = inlined_call_operand.vmem [shape: f32[1,128], index: 2, kind: input, shape index: {}]
  %s3 = inlined_call_operand.vmem [shape: f32[512,128], index: 3, kind: input, shape index: {}]
  %s4 = inlined_call_operand.vmem [shape: f32[2,8,128], index: 4, kind: output, shape index: {}]
  %s5 = sld [smem:[#allocation0]]
  $region57: #{cmal_normalized_mean_absolute.1} parent=0
    _
  %s7 = ssub.s32 1, %s5
  %s8 = scalar_select 0, %s7, %s5
  loop: start=0, step=1, limit=4
  $region2: #{cmal_normalized_mean_absolute.1} parent=0 // loop_pre_header
    _
  $region3: #{cmal_normalized_mean_absolute.1} parent=0 // loop_header
    %s10 = sphi 0, %s14
    %p11 = scmp.ge.s32.totalorder %s10, 4
    %s17 = sphi 0, %s29
    %s18 = sphi 0, %s25
    %s19 = sphi 0, %s17
    %s20 = sphi 0, %s18
    %s21 = sphi 0, %s19
    %s22 = sphi 0, %s20
    %s38 = sphi 0, %s40
    %s41 = sphi 0, %s38
    %s42 = sphi 0, %s41
    %s58 = sphi 0, %s42
    %s70 = sphi 0, %s72
    %s73 = sphi 0, %s70
    %s74 = sphi 0, %s73
    %s90 = sphi 0, %s74
    %s102 = sphi 0, %s104
    %s105 = sphi 0, %s102
    %s106 = sphi 0, %s105
    %s122 = sphi 0, %s106
    %s126 = sphi 0, %s126
    %s128 = sphi 0, %s126
    %s129 = sphi 0, %s128
    %s143 = sphi 0, %s129
    %s149 = sphi 0, %s151
    %s152 = sphi 0, %s149
    %s153 = sphi 0, %s152
    %s169 = sphi 0, %s153
  $region4: #{cmal_normalized_mean_absolute.1} parent=0 // loop_header_branch
    %13 = sbr.rel (%p11) target = $region8
  $region5: #{cmal_normalized_mean_absolute.1} parent=0 // loop_body
    %s15 = ssub.s32 %s10, 1
    %s16 = ssub.s32 %s10, 2
    %s23 = sadd.s32 1, %s18
    %p24 = scmp.ge.s32.totalorder %s23, 1
    %s25 = scalar_select %p24, 0, %s23
    %s26 = sadd.s32 1, %s17
    %s27 = scalar_select %p24, %s26, %s17
    %p28 = scmp.ge.s32.totalorder %s27, 2
    %s29 = scalar_select %p28, 0, %s27
    %s30 = sadd.s32 %s17, %s18
    %p31 = scmp.lt.s32.totalorder %s30, 0
    %s32 = scalar_select %p31, %s30, 0
    %s33 = sadd.s32 %s29, %s25
    %p34 = scmp.lt.s32.totalorder %s33, 0
    %s35 = scalar_select %p34, %s33, 0
    %s36 = ssub.s32 %s32, %s35
    %p37 = scmp.eq.s32.totalorder %s36, 0
    %s39 = sadd.s32 %s38, 1
    %s40 = scalar_select %p37, %s38, %s39
    %p43 = pneg %p37
    %p44 = scmp.eq.s32.totalorder %s10, 1
    %p45 = por %p43, %p44
    %p46 = scmp.ne.s32.totalorder %s38, %s41
    %p47 = scmp.eq.s32.totalorder %s10, 0
    %p48 = por %p46, %p47
    %p49 = scmp.ne.s32.totalorder %s38, %s41
    %p50 = scmp.eq.s32.totalorder %s15, 1
    %p51 = por %p49, %p50
    %p52 = scmp.ne.s32.totalorder %s41, %s42
    %p53 = scmp.eq.s32.totalorder %s15, 0
    %p54 = por %p52, %p53
    %p55 = scmp.ne.s32.totalorder %s41, %s42
    %p56 = scmp.eq.s32.totalorder %s16, 1
    %p57 = por %p55, %p56
    %p59 = scmp.ne.s32.totalorder %s42, %s58
    %p60 = scmp.eq.s32.totalorder %s16, 0
    %p61 = por %p59, %p60
    %s62 = sadd.s32 %s17, %s18
    %p63 = scmp.lt.s32.totalorder %s62, 0
    %s64 = scalar_select %p63, %s62, 0
    %s65 = sadd.s32 %s29, %s25
    %p66 = scmp.lt.s32.totalorder %s65, 0
    %s67 = scalar_select %p66, %s65, 0
    %s68 = ssub.s32 %s64, %s67
    %p69 = scmp.eq.s32.totalorder %s68, 0
    %s71 = sadd.s32 %s70, 1
    %s72 = scalar_select %p69, %s70, %s71
    %p75 = pneg %p69
    %p76 = scmp.eq.s32.totalorder %s10, 1
    %p77 = por %p75, %p76
    %p78 = scmp.ne.s32.totalorder %s70, %s73
    %p79 = scmp.eq.s32.totalorder %s10, 0
    %p80 = por %p78, %p79
    %p81 = scmp.ne.s32.totalorder %s70, %s73
    %p82 = scmp.eq.s32.totalorder %s15, 1
    %p83 = por %p81, %p82
    %p84 = scmp.ne.s32.totalorder %s73, %s74
    %p85 = scmp.eq.s32.totalorder %s15, 0
    %p86 = por %p84, %p85
    %p87 = scmp.ne.s32.totalorder %s73, %s74
    %p88 = scmp.eq.s32.totalorder %s16, 1
    %p89 = por %p87, %p88
    %p91 = scmp.ne.s32.totalorder %s74, %s90
    %p92 = scmp.eq.s32.totalorder %s16, 0
    %p93 = por %p91, %p92
    %s94 = sadd.s32 %s17, %s18
    %p95 = scmp.lt.s32.totalorder %s94, 0
    %s96 = scalar_select %p95, %s94, 0
    %s97 = sadd.s32 %s29, %s25
    %p98 = scmp.lt.s32.totalorder %s97, 0
    %s99 = scalar_select %p98, %s97, 0
    %s100 = ssub.s32 %s96, %s99
    %p101 = scmp.eq.s32.totalorder %s100, 0
    %s103 = sadd.s32 %s102, 1
    %s104 = scalar_select %p101, %s102, %s103
    %p107 = pneg %p101
    %p108 = scmp.eq.s32.totalorder %s10, 1
    %p109 = por %p107, %p108
    %p110 = scmp.ne.s32.totalorder %s102, %s105
    %p111 = scmp.eq.s32.totalorder %s10, 0
    %p112 = por %p110, %p111
    %p113 = scmp.ne.s32.totalorder %s102, %s105
    %p114 = scmp.eq.s32.totalorder %s15, 1
    %p115 = por %p113, %p114
    %p116 = scmp.ne.s32.totalorder %s105, %s106
    %p117 = scmp.eq.s32.totalorder %s15, 0
    %p118 = por %p116, %p117
    %p119 = scmp.ne.s32.totalorder %s105, %s106
    %p120 = scmp.eq.s32.totalorder %s16, 1
    %p121 = por %p119, %p120
    %p123 = scmp.ne.s32.totalorder %s106, %s122
    %p124 = scmp.eq.s32.totalorder %s16, 0
    %p125 = por %p123, %p124
    %s127 = sadd.s32 %s126, 1
    %p130 = scmp.eq.s32.totalorder %s10, 1
    %p131 = scmp.ne.s32.totalorder %s126, %s128
    %p132 = scmp.eq.s32.totalorder %s10, 0
    %p133 = por %p131, %p132
    %p134 = scmp.ne.s32.totalorder %s126, %s128
    %p135 = scmp.eq.s32.totalorder %s15, 1
    %p136 = por %p134, %p135
    %p137 = scmp.ne.s32.totalorder %s128, %s129
    %p138 = scmp.eq.s32.totalorder %s15, 0
    %p139 = por %p137, %p138
    %p140 = scmp.ne.s32.totalorder %s128, %s129
    %p141 = scmp.eq.s32.totalorder %s16, 1
    %p142 = por %p140, %p141
    %p144 = scmp.ne.s32.totalorder %s129, %s143
    %p145 = scmp.eq.s32.totalorder %s16, 0
    %p146 = por %p144, %p145
    %s147 = ssub.s32 %s17, %s29
    %p148 = scmp.eq.s32.totalorder %s147, 0
    %s150 = sadd.s32 %s149, 1
    %s151 = scalar_select %p148, %s149, %s150
    %p154 = pneg %p148
    %p155 = scmp.eq.s32.totalorder %s10, 1
    %p156 = por %p154, %p155
    %p157 = scmp.ne.s32.totalorder %s149, %s152
    %p158 = scmp.eq.s32.totalorder %s10, 0
    %p159 = por %p157, %p158
    %p160 = scmp.ne.s32.totalorder %s149, %s152
    %p161 = scmp.eq.s32.totalorder %s15, 1
    %p162 = por %p160, %p161
    %p163 = scmp.ne.s32.totalorder %s152, %s153
    %p164 = scmp.eq.s32.totalorder %s15, 0
    %p165 = por %p163, %p164
    %p166 = scmp.ne.s32.totalorder %s152, %s153
    %p167 = scmp.eq.s32.totalorder %s16, 1
    %p168 = por %p166, %p167
    %p170 = scmp.ne.s32.totalorder %s153, %s169
    %p171 = scmp.eq.s32.totalorder %s16, 0
    %p172 = por %p170, %p171
    %p173 = scmp.le.s32.totalorder 1, %s10
    %p174 = scmp.lt.s32.totalorder %s10, 3
    %p175 = pnand %p173, %p174
    %p176 = pneg %p175
    // Predicated region
    $region9: #{cmal_normalized_mean_absolute.1} parent=5 // pred_check
      _
    $region10: #{cmal_normalized_mean_absolute.1} parent=5 // pred_check_branch
      %178 = sbr.rel (%p175) target = $region12
    $region11: #{cmal_normalized_mean_absolute.1} parent=5 // pred_region
      %s179 = ssub.s32 %s10, 1
      // Predicated region
      $region13: #{cmal_normalized_mean_absolute.1} parent=11 // pred_check
        %p180 = pneg %p139
      $region14: #{cmal_normalized_mean_absolute.1} parent=11 // pred_check_branch
        %182 = sbr.rel (%p180) target = $region16
      $region15: #{cmal_normalized_mean_absolute.1} parent=11 // pred_region
        _
      $region16: #{cmal_normalized_mean_absolute.1} parent=11 // pred_fallthru
        _
    $region12: #{cmal_normalized_mean_absolute.1} parent=5 // pred_fallthru
      _
    %p183 = scmp.lt.s32.totalorder %s10, 2
    // Predicated region
    $region17: #{cmal_normalized_mean_absolute.1} parent=5 // pred_check
      %p184 = pneg %p183
    $region18: #{cmal_normalized_mean_absolute.1} parent=5 // pred_check_branch
      %186 = sbr.rel (%p184) target = $region20
    $region19: #{cmal_normalized_mean_absolute.1} parent=5 // pred_region
      // Predicated region
      $region21: #{cmal_normalized_mean_absolute.1} parent=19 // pred_check
        %p187 = pneg %p48
      $region22: #{cmal_normalized_mean_absolute.1} parent=19 // pred_check_branch
        %189 = sbr.rel (%p187) target = $region24
      $region23: #{cmal_normalized_mean_absolute.1} parent=19 // pred_region
        %s190 = sadd.s32 %s17, %s18
        %p191 = scmp.lt.s32.totalorder %s190, 0
        %s192 = scalar_select %p191, %s190, 0
        %p193 = scmp.lt.s32.totalorder %s192, 0
        %s194 = scalar_select %p193, %s192, 0
        %s195 = smul.addr %s194, 4
        %s196 = scalar_lea.vmem %s0, %s195
        %s197 = sadd.s32 %s17, %s18
        %p198 = scmp.lt.s32.totalorder %s197, 0
        %s199 = scalar_select %p198, %s197, 0
      $region24: #{cmal_normalized_mean_absolute.1} parent=19 // pred_fallthru
        _
      // Predicated region
      $region25: #{cmal_normalized_mean_absolute.1} parent=19 // pred_check
        %p200 = pneg %p80
      $region26: #{cmal_normalized_mean_absolute.1} parent=19 // pred_check_branch
        %202 = sbr.rel (%p200) target = $region28
      $region27: #{cmal_normalized_mean_absolute.1} parent=19 // pred_region
        %s203 = sadd.s32 %s17, %s18
        %p204 = scmp.lt.s32.totalorder %s203, 0
        %s205 = scalar_select %p204, %s203, 0
        %p206 = scmp.lt.s32.totalorder %s205, 0
        %s207 = scalar_select %p206, %s205, 0
        %s208 = smul.addr %s207, 4
        %s209 = scalar_lea.vmem %s1, %s208
        %s210 = sadd.s32 %s17, %s18
        %p211 = scmp.lt.s32.totalorder %s210, 0
        %s212 = scalar_select %p211, %s210, 0
      $region28: #{cmal_normalized_mean_absolute.1} parent=19 // pred_fallthru
        _
      // Predicated region
      $region29: #{cmal_normalized_mean_absolute.1} parent=19 // pred_check
        %p213 = pneg %p112
      $region30: #{cmal_normalized_mean_absolute.1} parent=19 // pred_check_branch
        %215 = sbr.rel (%p213) target = $region32
      $region31: #{cmal_normalized_mean_absolute.1} parent=19 // pred_region
        %s216 = sadd.s32 %s17, %s18
        %p217 = scmp.lt.s32.totalorder %s216, 0
        %s218 = scalar_select %p217, %s216, 0
        %p219 = scmp.lt.s32.totalorder %s218, 0
        %s220 = scalar_select %p219, %s218, 0
        %s221 = scalar_lea.vmem %s2, %s220
        %s222 = sadd.s32 %s17, %s18
        %p223 = scmp.lt.s32.totalorder %s222, 0
        %s224 = scalar_select %p223, %s222, 0
      $region32: #{cmal_normalized_mean_absolute.1} parent=19 // pred_fallthru
        _
    $region20: #{cmal_normalized_mean_absolute.1} parent=5 // pred_fallthru
      _
    %p225 = scmp.le.s32.totalorder 1, %s10
    %p226 = scmp.lt.s32.totalorder %s10, 3
    %p227 = pnand %p225, %p226
    %p228 = pneg %p227
    // Predicated region
    $region33: #{cmal_normalized_mean_absolute.1} parent=5 // pred_check
      _
    $region34: #{cmal_normalized_mean_absolute.1} parent=5 // pred_check_branch
      %230 = sbr.rel (%p227) target = $region36
    $region35: #{cmal_normalized_mean_absolute.1} parent=5 // pred_region
      %s231 = ssub.s32 %s10, 1
      %s232 = sadd.s32 %s19, %s20
      %p233 = scmp.lt.s32.totalorder %s232, 0
      %s234 = scalar_select %p233, %s232, 0
      %p235 = scmp.lt.s32.totalorder %s234, 0
      %s236 = scalar_select %p235, %s234, 0
      %s237 = smul.addr %s236, 4
      %s238 = scalar_lea.vmem %s0, %s237
      %p239 = pneg %p54
      %p240 = pneg %p51
      %s241 = sadd.s32 %s19, %s20
      %p242 = scmp.lt.s32.totalorder %s241, 0
      %s243 = scalar_select %p242, %s241, 0
      %p244 = scmp.lt.s32.totalorder %s243, 0
      %s245 = scalar_select %p244, %s243, 0
      %s246 = smul.addr %s245, 4
      %s247 = scalar_lea.vmem %s1, %s246
      %p248 = pneg %p86
      %p249 = pneg %p83
      %s250 = sadd.s32 %s19, %s20
      %p251 = scmp.lt.s32.totalorder %s250, 0
      %s252 = scalar_select %p251, %s250, 0
      %p253 = scmp.lt.s32.totalorder %s252, 0
      %s254 = scalar_select %p253, %s252, 0
      %s255 = scalar_lea.vmem %s2, %s254
      %p256 = pneg %p118
      %p257 = pneg %p115
      %p258 = pneg %p139
      %p259 = pneg %p136
      %p260 = pneg %p165
      %p261 = pneg %p162
      %p262 = scmp.lt.s32.totalorder %s19, 1
      %s263 = scalar_select %p262, %s19, 1
      %s264 = smul.addr %s263, 8
      %s265 = scalar_lea.vmem %s4, %s264
      %s266 = sadd.s32 %s19, %s20
      %p267 = scmp.lt.s32.totalorder %s266, 0
      %s268 = scalar_select %p267, %s266, 0
      %p269 = scmp.lt.s32.totalorder %s268, 0
      %s270 = scalar_select %p269, %s268, 0
      %s271 = smul.addr %s270, 4
      %s272 = scalar_lea.vmem %s0, %s271
      %s273 = sadd.s32 %s19, %s20
      %p274 = scmp.lt.s32.totalorder %s273, 0
      %s275 = scalar_select %p274, %s273, 0
      %s276 = sadd.s32 %s19, %s20
      %p277 = scmp.lt.s32.totalorder %s276, 0
      %s278 = scalar_select %p277, %s276, 0
      %p279 = scmp.lt.s32.totalorder %s278, 0
      %s280 = scalar_select %p279, %s278, 0
      %s281 = smul.addr %s280, 4
      %s282 = scalar_lea.vmem %s1, %s281
      %s283 = sadd.s32 %s19, %s20
      %p284 = scmp.lt.s32.totalorder %s283, 0
      %s285 = scalar_select %p284, %s283, 0
      %s286 = sadd.s32 %s19, %s20
      %p287 = scmp.lt.s32.totalorder %s286, 0
      %s288 = scalar_select %p287, %s286, 0
      %p289 = scmp.lt.s32.totalorder %s288, 0
      %s290 = scalar_select %p289, %s288, 0
      %s291 = scalar_lea.vmem %s2, %s290
      %s292 = sadd.s32 %s19, %s20
      %p293 = scmp.lt.s32.totalorder %s292, 0
      %s294 = scalar_select %p293, %s292, 0
      %p295 = scmp.lt.s32.totalorder %s19, 1
      %s296 = scalar_select %p295, %s19, 1
      %s297 = smul.addr %s296, 8
      %s298 = scalar_lea.vmem %s4, %s297
      %p299 = scmp.eq.s32.totalorder %s20, 0
      // Predicated region
      $region37: #{cmal_normalized_mean_absolute.1} parent=35 // pred_check
        %p300 = pneg %p299
      $region38: #{cmal_normalized_mean_absolute.1} parent=35 // pred_check_branch
        %302 = sbr.rel (%p300) target = $region40
      $region39: #{cmal_normalized_mean_absolute.1} parent=35 // pred_region
        %303 = vst [vmem:[#allocation2] sm:$0x1] 0.0
      $region40: #{cmal_normalized_mean_absolute.1} parent=35 // pred_fallthru
        _
      %v304 = vld [vmem:[%s272] sm:$0xf]
      %v305 = vld [vmem:[%s282] sm:$0xf]
      %v306 = vmul.f32 %v304, %v305
      %v307 = vld [vmem:[%s3] sm:$0xff]
      %v308 = vld [vmem:[%s3 + $0x8] sm:$0xff]
      %v309 = vld [vmem:[%s3 + $0x10] sm:$0xff]
      %v310 = vld [vmem:[%s3 + $0x18] sm:$0xff]
      %v311 = vld [vmem:[%s3 + $0x20] sm:$0xff]
      %v312 = vld [vmem:[%s3 + $0x28] sm:$0xff]
      %v313 = vld [vmem:[%s3 + $0x30] sm:$0xff]
      %v314 = vld [vmem:[%s3 + $0x38] sm:$0xff]
      %v315 = vld [vmem:[%s3 + $0x40] sm:$0xff]
      %v316 = vld [vmem:[%s3 + $0x48] sm:$0xff]
      %v317 = vld [vmem:[%s3 + $0x50] sm:$0xff]
      %v318 = vld [vmem:[%s3 + $0x58] sm:$0xff]
      %v319 = vld [vmem:[%s3 + $0x60] sm:$0xff]
      %v320 = vld [vmem:[%s3 + $0x68] sm:$0xff]
      %v321 = vld [vmem:[%s3 + $0x70] sm:$0xff]
      %v322 = vld [vmem:[%s3 + $0x78] sm:$0xff]
      %v323 = vld [vmem:[%s3 + $0x80] sm:$0xff]
      %v324 = vld [vmem:[%s3 + $0x88] sm:$0xff]
      %v325 = vld [vmem:[%s3 + $0x90] sm:$0xff]
      %v326 = vld [vmem:[%s3 + $0x98] sm:$0xff]
      %v327 = vld [vmem:[%s3 + $0xa0] sm:$0xff]
      %v328 = vld [vmem:[%s3 + $0xa8] sm:$0xff]
      %v329 = vld [vmem:[%s3 + $0xb0] sm:$0xff]
      %v330 = vld [vmem:[%s3 + $0xb8] sm:$0xff]
      %v331 = vld [vmem:[%s3 + $0xc0] sm:$0xff]
      %v332 = vld [vmem:[%s3 + $0xc8] sm:$0xff]
      %v333 = vld [vmem:[%s3 + $0xd0] sm:$0xff]
      %v334 = vld [vmem:[%s3 + $0xd8] sm:$0xff]
      %v335 = vld [vmem:[%s3 + $0xe0] sm:$0xff]
      %v336 = vld [vmem:[%s3 + $0xe8] sm:$0xff]
      %v337 = vld [vmem:[%s3 + $0xf0] sm:$0xff]
      %v338 = vld [vmem:[%s3 + $0xf8] sm:$0xff]
      %v339 = vld [vmem:[%s3 + $0x100] sm:$0xff]
      %v340 = vld [vmem:[%s3 + $0x108] sm:$0xff]
      %v341 = vld [vmem:[%s3 + $0x110] sm:$0xff]
      %v342 = vld [vmem:[%s3 + $0x118] sm:$0xff]
      %v343 = vld [vmem:[%s3 + $0x120] sm:$0xff]
      %v344 = vld [vmem:[%s3 + $0x128] sm:$0xff]
      %v345 = vld [vmem:[%s3 + $0x130] sm:$0xff]
      %v346 = vld [vmem:[%s3 + $0x138] sm:$0xff]
      %v347 = vld [vmem:[%s3 + $0x140] sm:$0xff]
      %v348 = vld [vmem:[%s3 + $0x148] sm:$0xff]
      %v349 = vld [vmem:[%s3 + $0x150] sm:$0xff]
      %v350 = vld [vmem:[%s3 + $0x158] sm:$0xff]
      %v351 = vld [vmem:[%s3 + $0x160] sm:$0xff]
      %v352 = vld [vmem:[%s3 + $0x168] sm:$0xff]
      %v353 = vld [vmem:[%s3 + $0x170] sm:$0xff]
      %v354 = vld [vmem:[%s3 + $0x178] sm:$0xff]
      %v355 = vld [vmem:[%s3 + $0x180] sm:$0xff]
      %v356 = vld [vmem:[%s3 + $0x188] sm:$0xff]
      %v357 = vld [vmem:[%s3 + $0x190] sm:$0xff]
      %v358 = vld [vmem:[%s3 + $0x198] sm:$0xff]
      %v359 = vld [vmem:[%s3 + $0x1a0] sm:$0xff]
      %v360 = vld [vmem:[%s3 + $0x1a8] sm:$0xff]
      %v361 = vld [vmem:[%s3 + $0x1b0] sm:$0xff]
      %v362 = vld [vmem:[%s3 + $0x1b8] sm:$0xff]
      %v363 = vld [vmem:[%s3 + $0x1c0] sm:$0xff]
      %v364 = vld [vmem:[%s3 + $0x1c8] sm:$0xff]
      %v365 = vld [vmem:[%s3 + $0x1d0] sm:$0xff]
      %v366 = vld [vmem:[%s3 + $0x1d8] sm:$0xff]
      %v367 = vld [vmem:[%s3 + $0x1e0] sm:$0xff]
      %v368 = vld [vmem:[%s3 + $0x1e8] sm:$0xff]
      %v369 = vld [vmem:[%s3 + $0x1f0] sm:$0xff]
      %v370 = vld [vmem:[%s3 + $0x1f8] sm:$0xff]
      %v372 = vlaneseq
      %v373 = vshrl.u32 %v372, 7
      %v374 = vsub.s32 0, %v373
      %v375 = vrot.slane %v306, %v374
      %v376 = vlaneseq
      %v377 = vshrl.u32 %v376, 7
      %v378 = vsub.s32 1, %v377
      %v379 = vrot.slane %v306, %v378
      %v380 = vlaneseq
      %v381 = vshrl.u32 %v380, 7
      %v382 = vsub.s32 2, %v381
      %v383 = vrot.slane %v306, %v382
      %v384 = vlaneseq
      %v385 = vshrl.u32 %v384, 7
      %v386 = vsub.s32 3, %v385
      %v387 = vrot.slane %v306, %v386
      %392 = vmatprep.subr.mxu0 0.0
      %393 = vmatpush1.msra.mxu0 %v307
      %394 = vmatprep.subr.mxu0 0.0
      %395 = vmatpush1.msra.mxu0 %v308
      %396 = vmatprep.subr.mxu0 0.0
      %397 = vmatpush1.msra.mxu0 %v309
      %398 = vmatprep.subr.mxu0 0.0
      %399 = vmatpush1.msra.mxu0 %v310
      %400 = vmatprep.subr.mxu0 0.0
      %401 = vmatpush1.msra.mxu0 %v311
      %402 = vmatprep.subr.mxu0 0.0
      %403 = vmatpush1.msra.mxu0 %v312
      %404 = vmatprep.subr.mxu0 0.0
      %405 = vmatpush1.msra.mxu0 %v313
      %406 = vmatprep.subr.mxu0 0.0
      %407 = vmatpush1.msra.mxu0 %v314
      %408 = vmatprep.subr.mxu0 0.0
      %409 = vmatpush1.msra.mxu0 %v315
      %410 = vmatprep.subr.mxu0 0.0
      %411 = vmatpush1.msra.mxu0 %v316
      %412 = vmatprep.subr.mxu0 0.0
      %413 = vmatpush1.msra.mxu0 %v317
      %414 = vmatprep.subr.mxu0 0.0
      %415 = vmatpush1.msra.mxu0 %v318
      %416 = vmatprep.subr.mxu0 0.0
      %417 = vmatpush1.msra.mxu0 %v319
      %418 = vmatprep.subr.mxu0 0.0
      %419 = vmatpush1.msra.mxu0 %v320
      %420 = vmatprep.subr.mxu0 0.0
      %421 = vmatpush1.msra.mxu0 %v321
      %422 = vmatprep.subr.mxu0 0.0
      %423 = vmatpush1.msra.mxu0 %v322
      %424 = vmatprep.subr.mxu0 0.0
      %425 = vmatpush1.msra.mxu0 %v323
      %426 = vmatprep.subr.mxu0 0.0
      %427 = vmatpush1.msra.mxu0 %v324
      %428 = vmatprep.subr.mxu0 0.0
      %429 = vmatpush1.msra.mxu0 %v325
      %430 = vmatprep.subr.mxu0 0.0
      %431 = vmatpush1.msra.mxu0 %v326
      %432 = vmatprep.subr.mxu0 0.0
      %433 = vmatpush1.msra.mxu0 %v327
      %434 = vmatprep.subr.mxu0 0.0
      %435 = vmatpush1.msra.mxu0 %v328
      %436 = vmatprep.subr.mxu0 0.0
      %437 = vmatpush1.msra.mxu0 %v329
      %438 = vmatprep.subr.mxu0 0.0
      %439 = vmatpush1.msra.mxu0 %v330
      %440 = vmatprep.subr.mxu0 0.0
      %441 = vmatpush1.msra.mxu0 %v331
      %442 = vmatprep.subr.mxu0 0.0
      %443 = vmatpush1.msra.mxu0 %v332
      %444 = vmatprep.subr.mxu0 0.0
      %445 = vmatpush1.msra.mxu0 %v333
      %446 = vmatprep.subr.mxu0 0.0
      %447 = vmatpush1.msra.mxu0 %v334
      %448 = vmatprep.subr.mxu0 0.0
      %449 = vmatpush1.msra.mxu0 %v335
      %450 = vmatprep.subr.mxu0 0.0
      %451 = vmatpush1.msra.mxu0 %v336
      %452 = vmatprep.subr.mxu0 0.0
      %453 = vmatpush1.msra.mxu0 %v337
      %454 = vmatprep.subr.mxu0 0.0
      %455 = vmatpush1.msra.mxu0 %v338
      %456 = vmatprep.mubr.f32.mxu0 %v379
      %457 = vmatmul.mubr.f32.gmra.mrb[0].mxu0 %v375
      %v458 = vpop.f32.mrb[0].mxu0
      %v459 = vadd.f32 0.0, %v458
      %v460 = vpop.f32.mrb[0].mxu0
      %461 = vdwg.mxu0
      %462 = vmatprep.subr.mxu0 0.0
      %463 = vmatpush1.msra.mxu0 %v339
      %464 = vmatprep.subr.mxu0 0.0
      %465 = vmatpush1.msra.mxu0 %v340
      %466 = vmatprep.subr.mxu0 0.0
      %467 = vmatpush1.msra.mxu0 %v341
      %468 = vmatprep.subr.mxu0 0.0
      %469 = vmatpush1.msra.mxu0 %v342
      %470 = vmatprep.subr.mxu0 0.0
      %471 = vmatpush1.msra.mxu0 %v343
      %472 = vmatprep.subr.mxu0 0.0
      %473 = vmatpush1.msra.mxu0 %v344
      %474 = vmatprep.subr.mxu0 0.0
      %475 = vmatpush1.msra.mxu0 %v345
      %476 = vmatprep.subr.mxu0 0.0
      %477 = vmatpush1.msra.mxu0 %v346
      %478 = vmatprep.subr.mxu0 0.0
      %479 = vmatpush1.msra.mxu0 %v347
      %480 = vmatprep.subr.mxu0 0.0
      %481 = vmatpush1.msra.mxu0 %v348
      %482 = vmatprep.subr.mxu0 0.0
      %483 = vmatpush1.msra.mxu0 %v349
      %484 = vmatprep.subr.mxu0 0.0
      %485 = vmatpush1.msra.mxu0 %v350
      %486 = vmatprep.subr.mxu0 0.0
      %487 = vmatpush1.msra.mxu0 %v351
      %488 = vmatprep.subr.mxu0 0.0
      %489 = vmatpush1.msra.mxu0 %v352
      %490 = vmatprep.subr.mxu0 0.0
      %491 = vmatpush1.msra.mxu0 %v353
      %492 = vmatprep.subr.mxu0 0.0
      %493 = vmatpush1.msra.mxu0 %v354
      %494 = vmatprep.subr.mxu0 0.0
      %495 = vmatpush1.msra.mxu0 %v355
      %496 = vmatprep.subr.mxu0 0.0
      %497 = vmatpush1.msra.mxu0 %v356
      %498 = vmatprep.subr.mxu0 0.0
      %499 = vmatpush1.msra.mxu0 %v357
      %500 = vmatprep.subr.mxu0 0.0
      %501 = vmatpush1.msra.mxu0 %v358
      %502 = vmatprep.subr.mxu0 0.0
      %503 = vmatpush1.msra.mxu0 %v359
      %504 = vmatprep.subr.mxu0 0.0
      %505 = vmatpush1.msra.mxu0 %v360
      %506 = vmatprep.subr.mxu0 0.0
      %507 = vmatpush1.msra.mxu0 %v361
      %508 = vmatprep.subr.mxu0 0.0
      %509 = vmatpush1.msra.mxu0 %v362
      %510 = vmatprep.subr.mxu0 0.0
      %511 = vmatpush1.msra.mxu0 %v363
      %512 = vmatprep.subr.mxu0 0.0
      %513 = vmatpush1.msra.mxu0 %v364
      %514 = vmatprep.subr.mxu0 0.0
      %515 = vmatpush1.msra.mxu0 %v365
      %516 = vmatprep.subr.mxu0 0.0
      %517 = vmatpush1.msra.mxu0 %v366
      %518 = vmatprep.subr.mxu0 0.0
      %519 = vmatpush1.msra.mxu0 %v367
      %520 = vmatprep.subr.mxu0 0.0
      %521 = vmatpush1.msra.mxu0 %v368
      %522 = vmatprep.subr.mxu0 0.0
      %523 = vmatpush1.msra.mxu0 %v369
      %524 = vmatprep.subr.mxu0 0.0
      %525 = vmatpush1.msra.mxu0 %v370
      %526 = vmatprep.mubr.f32.mxu0 %v387
      %527 = vmatmul.mubr.f32.gmra.mrb[0].mxu0 %v383
      %v528 = vpop.f32.mrb[0].mxu0
      %v529 = vadd.f32 %v459, %v528
      %v530 = vpop.f32.mrb[0].mxu0
      %531 = vdwg.mxu0
      %v532 = vld [vmem:[%s291] sm:$0x1]
      %v533 = vsub.f32 %v529, %v532
      %v534 = vand.u32 2147483647, %v533
      %s535 = sadd.s32 %s19, %s20
      %v536 = vlaneseq
      %v537 = vshrl.u32 %v536, 7
      %v538 = vstv %s535
      %v539 = vadd.s32 %v538, %v537
      %v540 = vld [vmem:[#allocation2] sm:$0x1]
      %vm541 = vcmp.lt.s32.totalorder %v539, 1
      %v542 = vsel %vm541, %v534, 0.0
      %v543 = vadd.f32 %v540, %v542
      %544 = vst [vmem:[#allocation2] sm:$0x1] %v543
      // Predicated region
      $region41: #{cmal_normalized_mean_absolute.1} parent=35 // pred_check
        %p545 = pneg %p299
      $region42: #{cmal_normalized_mean_absolute.1} parent=35 // pred_check_branch
        %547 = sbr.rel (%p545) target = $region44
      $region43: #{cmal_normalized_mean_absolute.1} parent=35 // pred_region
        %v548 = vld [vmem:[#allocation2] sm:$0x1]
        %vm549 = vcmask 1040384
        %v550 = vsel %vm549, %v548, 0.0
        %551 = vadd.xlane.f32.xlu0 %v550
        %v552 = vpop.xlane.xlu0 %551
        %v553 = vrot.slane %v552, 4
        %v554 = vadd.f32 %v552, %v553
        %v555 = vrot.slane %v554, 2
        %v556 = vadd.f32 %v554, %v555
        %v557 = vrot.slane %v556, 1
        %v558 = vadd.f32 %v556, %v557
        %s559 = vtos %v558
        %v560 = vstv %s559
        %561 = vst [vmem:[%s298] sm:$0xff] %v560
      $region44: #{cmal_normalized_mean_absolute.1} parent=35 // pred_fallthru
        _
      %p562 = scmp.lt.s32.totalorder %s19, 1
      %s563 = scalar_select %p562, %s19, 1
      %s564 = smul.addr %s563, 8
      %s565 = scalar_lea.vmem %s4, %s564
      // Predicated region
      $region45: #{cmal_normalized_mean_absolute.1} parent=35 // pred_check
        %p566 = pneg %p162
      $region46: #{cmal_normalized_mean_absolute.1} parent=35 // pred_check_branch
        %568 = sbr.rel (%p566) target = $region48
      $region47: #{cmal_normalized_mean_absolute.1} parent=35 // pred_region
        _
      $region48: #{cmal_normalized_mean_absolute.1} parent=35 // pred_fallthru
        _
    $region36: #{cmal_normalized_mean_absolute.1} parent=5 // pred_fallthru
      _
    %p569 = scmp.le.s32.totalorder 2, %s10
    // Predicated region
    $region49: #{cmal_normalized_mean_absolute.1} parent=5 // pred_check
      %p570 = pneg %p569
    $region50: #{cmal_normalized_mean_absolute.1} parent=5 // pred_check_branch
      %572 = sbr.rel (%p570) target = $region52
    $region51: #{cmal_normalized_mean_absolute.1} parent=5 // pred_region
      %s573 = ssub.s32 %s10, 2
      // Predicated region
      $region53: #{cmal_normalized_mean_absolute.1} parent=51 // pred_check
        %p574 = pneg %p168
      $region54: #{cmal_normalized_mean_absolute.1} parent=51 // pred_check_branch
        %576 = sbr.rel (%p574) target = $region56
      $region55: #{cmal_normalized_mean_absolute.1} parent=51 // pred_region
        %p577 = scmp.lt.s32.totalorder %s21, 1
        %s578 = scalar_select %p577, %s21, 1
        %s579 = smul.addr %s578, 8
        %s580 = scalar_lea.vmem %s4, %s579
      $region56: #{cmal_normalized_mean_absolute.1} parent=51 // pred_fallthru
        _
    $region52: #{cmal_normalized_mean_absolute.1} parent=5 // pred_fallthru
      _
  $region6: #{cmal_normalized_mean_absolute.1} parent=0 // loop_footer
    %s14 = sadd.s32 1, %s10
  $region7: #{cmal_normalized_mean_absolute.1} parent=0 // loop_footer_branch
    %9 = sbr.rel target = $region3
  $region8: #{cmal_normalized_mean_absolute.1} parent=0 // loop_exit
    _

</llo_original>
